<compile_context>
chip_gen: v6e
topology: v6e:2x2x1
jax: 0.10.0
libtpu: 0.0.40
codegen_flags: <defaults>
</compile_context>

<pallas_src>
import functools
import math

import jax
import jax.numpy as jnp
from jax.experimental import pallas as pl
from jax.experimental.pallas import tpu as pltpu


@functools.lru_cache(maxsize=None)
def _vmem_limit():
    """Per-generation scoped-VMEM budget (~48 MiB on v7x, ~96 MiB on v5e/v6e)."""
    try:
        phys = pltpu.get_tpu_info().vmem_capacity_bytes
    except Exception:
        phys = 64 * 1024 * 1024
    return int(min(max(phys * 3 // 4, 32 * 1024 * 1024), 100 * 1024 * 1024))


def _pick_tile(n, candidates):
    """Largest candidate that divides n, else n (a full-dim block is always legal)."""
    for t in candidates:
        if n % t == 0:
            return t
    return n


# ---------------------------------------------------------------------------
# Fused linear projections: y_i = x @ w_i + b_i (x read from HBM once).
# ---------------------------------------------------------------------------
def _make_proj_kernel(n_out):
    def kernel(*refs):
        x_ref = refs[0]
        w_refs = refs[1:1 + n_out]
        b_refs = refs[1 + n_out:1 + 2 * n_out]
        o_refs = refs[1 + 2 * n_out:1 + 3 * n_out]
        x = x_ref[...]                      # native dtype; MXU accumulates in f32
        for w_ref, b_ref, o_ref in zip(w_refs, b_refs, o_refs):
            acc = jnp.dot(x, w_ref[...], preferred_element_type=jnp.float32)
            o_ref[...] = (acc + b_ref[...].astype(jnp.float32)).astype(o_ref.dtype)
    return kernel


def fused_linear(x, weights, biases):
    rows, d_in = x.shape
    n_out = len(weights)
    d_out = weights[0].shape[1]
    assert all(w.shape == (d_in, d_out) for w in weights)
    itemsize = jnp.dtype(x.dtype).itemsize
    budget = _vmem_limit()

    # Tile d_out so the double-buffered weight blocks stay inside ~half the
    # VMEM budget (keeps d_model >= 4096 valid on v7x's 64 MiB VMEM).
    tn = d_out
    for t in (1024, 512, 256, 128):
        if d_out % t == 0:
            tn = t
            if 2 * n_out * d_in * t * itemsize <= budget // 2:
                break
    tm = _pick_tile(rows, (512, 256, 128, 64, 32, 16, 8))
    # TODO(synk): d_in is a single block; tile it with an f32 accumulator if
    #             d_in * (tm + n_out*tn) tiles ever outgrow VMEM.

    grid = (rows // tm, d_out // tn)
    in_specs = [pl.BlockSpec((tm, d_in), lambda i, j: (i, 0))]
    in_specs += [pl.BlockSpec((d_in, tn), lambda i, j: (0, j))] * n_out
    in_specs += [pl.BlockSpec((1, tn), lambda i, j: (0, j))] * n_out
    out_specs = [pl.BlockSpec((tm, tn), lambda i, j: (i, j)) for _ in range(n_out)]
    out_shapes = [jax.ShapeDtypeStruct((rows, d_out), x.dtype) for _ in range(n_out)]

    outs = pl.pallas_call(
        _make_proj_kernel(n_out),
        out_shape=tuple(out_shapes) if n_out > 1 else out_shapes[0],
        grid_spec=pltpu.PrefetchScalarGridSpec(
            num_scalar_prefetch=0,
            grid=grid,
            in_specs=in_specs,
            out_specs=tuple(out_specs) if n_out > 1 else out_specs[0],
        ),
        compiler_params=pltpu.CompilerParams(
            dimension_semantics=("parallel", "parallel"),
            vmem_limit_bytes=budget,
        ),
    )(x, *weights, *[b.reshape(1, d_out) for b in biases])
    return tuple(outs) if n_out > 1 else (outs,)


# ---------------------------------------------------------------------------
# Flash-style multi-head attention core over the [B, S, d_model] layout.
#   grid = (batch, head_groups, q_tiles, kv_tiles)
# ---------------------------------------------------------------------------
def _mha_attention_kernel(q_ref, k_ref, v_ref, bias_ref, o_ref,
                          m_sc, l_sc, acc_sc, *, heads, d_k, scale):
    kv_idx = pl.program_id(3)

    @pl.when(kv_idx == 0)
    def _():
        m_sc[...] = jnp.full_like(m_sc, -jnp.inf)
        l_sc[...] = jnp.zeros_like(l_sc)
        acc_sc[...] = jnp.zeros_like(acc_sc)

    q_tile = q_ref[0]                         # (tq, heads*d_k), native dtype
    k_tile = k_ref[0]                         # (tk, heads*d_k)
    v_tile = v_ref[0]                         # (tk, heads*d_k)
    bias = bias_ref[0].astype(jnp.float32)    # (tq, tk): additive 0 / -1e9 mask

    for hh in range(heads):                   # static unroll over the head group
        lo = hh * d_k
        q_h = q_tile[:, lo:lo + d_k] * scale  # 1/sqrt(d_k) folded into Q
        k_h = k_tile[:, lo:lo + d_k]
        v_h = v_tile[:, lo:lo + d_k]
        # scores: native-dtype MXU operands, f32 accumulation
        s = jax.lax.dot_general(q_h, k_h, (((1,), (1,)), ((), ())),
                                preferred_element_type=jnp.float32)
        s = s + bias
        m_prev = m_sc[hh]                                     # (tq, 1)
        m_new = jnp.maximum(m_prev, s.max(axis=-1, keepdims=True))
        alpha = jnp.exp(m_prev - m_new)
        p = jnp.exp(s - m_new)                                # (tq, tk) f32
        l_sc[hh] = alpha * l_sc[hh] + p.sum(axis=-1, keepdims=True)
        acc_sc[hh] = alpha * acc_sc[hh] + jnp.dot(
            p.astype(v_h.dtype), v_h, preferred_element_type=jnp.float32)
        m_sc[hh] = m_new

    @pl.when(kv_idx == pl.num_programs(3) - 1)
    def _():
        outs = []
        for hh in range(heads):
            inv = pl.reciprocal(l_sc[hh], approx=True)        # EUP slot, ~free
            outs.append(acc_sc[hh] * inv)
        out = outs[0] if heads == 1 else jnp.concatenate(outs, axis=-1)
        o_ref[0] = out.astype(o_ref.dtype)                    # lane-dense store


def _head_group(h, d_k):
    """Smallest group of adjacent heads whose fused lane width is a multiple of
    128 (lane-dense blocks & stores, better MXU fill); else all heads (a full
    d_model block is always a legal block shape)."""
    for g in range(1, h):
        if h % g == 0 and (g * d_k) % 128 == 0:
            return g
    return h


def _mask_to_bias(mask, b, s_q, s_kv):
    if mask is None:
        return jnp.zeros((b, s_q, s_kv), jnp.bfloat16)
    m = jnp.asarray(mask)
    if m.ndim == 4:
        # broadcast over the (size-1) head axis; per-head masks unsupported.
        m = jnp.broadcast_to(m, (b, 1, s_q, s_kv)).reshape(b, s_q, s_kv)
    else:
        m = jnp.broadcast_to(m, (b, s_q, s_kv))
    # Additive bias; bf16 halves the mask HBM traffic vs streaming an f32 mask.
    return jnp.where(m == 0, -1e9, 0.0).astype(jnp.bfloat16)


def multi_head_attention(q, k, v, mask, params, *, h, dropout_rate=0.0):
    """Forward pass of MultiHeadAttentionBlock (eval mode: dropout = identity)."""
    del dropout_rate  # TODO(synk): train-mode dropout not implemented
    wq, bq, wk, bk, wv, bv, wo, bo = params
    b, s_q, d_model = q.shape
    s_kv = k.shape[1]
    assert d_model % h == 0, "d_model is not divisible by h"
    d_k = d_model // h

    # --- projections (activation read once when q/k/v share storage) ---
    if q is k and k is v:
        qp, kp, vp = fused_linear(q.reshape(b * s_q, d_model),
                                  (wq, wk, wv), (bq, bk, bv))
    elif k is v:
        (qp,) = fused_linear(q.reshape(b * s_q, d_model), (wq,), (bq,))
        kp, vp = fused_linear(k.reshape(b * s_kv, d_model), (wk, wv), (bk, bv))
    else:
        (qp,) = fused_linear(q.reshape(b * s_q, d_model), (wq,), (bq,))
        (kp,) = fused_linear(k.reshape(b * s_kv, d_model), (wk,), (bk,))
        (vp,) = fused_linear(v.reshape(b * s_kv, d_model), (wv,), (bv,))

    # keep the lane-dense [B, S, d_model] layout -- no head transposes
    qp = qp.reshape(b, s_q, d_model)
    kp = kp.reshape(b, s_kv, d_model)
    vp = vp.reshape(b, s_kv, d_model)

    bias = _mask_to_bias(mask, b, s_q, s_kv)

    hg = _head_group(h, d_k)               # heads per grid step
    width = hg * d_k                       # lane width of each q/k/v/out block
    tq = _pick_tile(s_q, (512, 256, 128, 64, 32, 16, 8))
    tk = _pick_tile(s_kv, (512, 256, 128))  # bias last dim: 128-aligned or full
    grid = (b, h // hg, s_q // tq, s_kv // tk)

    attn = pl.pallas_call(
        functools.partial(_mha_attention_kernel, heads=hg, d_k=d_k,
                          scale=1.0 / math.sqrt(d_k)),
        out_shape=jax.ShapeDtypeStruct((b, s_q, d_model), q.dtype),
        grid_spec=pltpu.PrefetchScalarGridSpec(
            num_scalar_prefetch=0,
            grid=grid,
            in_specs=[
                pl.BlockSpec((1, tq, width), lambda bb, g, i, j: (bb, i, g)),
                pl.BlockSpec((1, tk, width), lambda bb, g, i, j: (bb, j, g)),
                pl.BlockSpec((1, tk, width), lambda bb, g, i, j: (bb, j, g)),
                pl.BlockSpec((1, tq, tk), lambda bb, g, i, j: (bb, i, j)),
            ],
            out_specs=pl.BlockSpec((1, tq, width), lambda bb, g, i, j: (bb, i, g)),
            scratch_shapes=[
                pltpu.VMEM((hg, tq, 1), jnp.float32),    # running max
                pltpu.VMEM((hg, tq, 1), jnp.float32),    # running sum
                pltpu.VMEM((hg, tq, d_k), jnp.float32),  # output accumulator
            ],
        ),
        compiler_params=pltpu.CompilerParams(
            dimension_semantics=("parallel", "parallel", "parallel", "arbitrary"),
            vmem_limit_bytes=_vmem_limit(),
        ),
    )(qp, kp, vp, bias)

    # merged-head output is already [B, S_q, d_model]; apply w_o
    (out,) = fused_linear(attn.reshape(b * s_q, d_model), (wo,), (bo,))
    return out.reshape(b, s_q, d_model)


# ---------------------------------------------------------------------------
# Pure-JAX reference (mirrors the PyTorch module, eval mode)
# ---------------------------------------------------------------------------
def _reference(q, k, v, mask, params, *, h):
    wq, bq, wk, bk, wv, bv, wo, bo = params
    b, s_q, d_model = q.shape
    s_kv = k.shape[1]
    d_k = d_model // h
    hp = jax.lax.Precision.HIGHEST

    query = jnp.matmul(q, wq, precision=hp) + bq
    key = jnp.matmul(k, wk, precision=hp) + bk
    value = jnp.matmul(v, wv, precision=hp) + bv
    query = query.reshape(b, s_q, h, d_k).transpose(0, 2, 1, 3)
    key = key.reshape(b, s_kv, h, d_k).transpose(0, 2, 1, 3)
    value = value.reshape(b, s_kv, h, d_k).transpose(0, 2, 1, 3)

    scores = jnp.matmul(query, jnp.swapaxes(key, -2, -1),
                        precision=hp) / math.sqrt(d_k)
    if mask is not None:
        scores = jnp.where(mask == 0, -1e9, scores)
    attn = jax.nn.softmax(scores, axis=-1)
    x = jnp.matmul(attn, value, precision=hp)
    x = x.transpose(0, 2, 1, 3).reshape(b, s_q, d_model)
    return jnp.matmul(x, wo, precision=hp) + bo


if __name__ == "__main__":
    batch, seq, d_model, h = 2, 8, 32, 4

    key = jax.random.PRNGKey(0)
    ks = jax.random.split(key, 11)
    x = jax.random.normal(ks[0], (batch, seq, d_model), jnp.float32)
    k_cross = jax.random.normal(ks[1], (batch, seq, d_model), jnp.float32)
    v_cross = jax.random.normal(ks[2], (batch, seq, d_model), jnp.float32)

    init = 1.0 / math.sqrt(d_model)
    wq = jax.random.normal(ks[3], (d_model, d_model), jnp.float32) * init
    wk = jax.random.normal(ks[4], (d_model, d_model), jnp.float32) * init
    wv = jax.random.normal(ks[5], (d_model, d_model), jnp.float32) * init
    wo = jax.random.normal(ks[6], (d_model, d_model), jnp.float32) * init
    bq = jax.random.normal(ks[7], (1, d_model), jnp.float32) * init
    bk = jax.random.normal(ks[8], (1, d_model), jnp.float32) * init
    bv = jax.random.normal(ks[9], (1, d_model), jnp.float32) * init
    bo = jax.random.normal(ks[10], (1, d_model), jnp.float32) * init
    params = (wq, bq, wk, bk, wv, bv, wo, bo)

    # Causal mask [batch, 1, seq, seq]; zeros are masked (filled with -1e9).
    mask = jnp.broadcast_to(
        jnp.tril(jnp.ones((seq, seq), jnp.float32))[None, None],
        (batch, 1, seq, seq))

    # 1) self-attention (fused QKV path), f32
    out = jax.block_until_ready(multi_head_attention(x, x, x, mask, params, h=h))
    ref = _reference(x, x, x, mask, params, h=h)
    assert out.shape == (batch, seq, d_model)
    err = float(jnp.max(jnp.abs(out - ref)))
    assert jnp.allclose(out, ref, atol=1e-2, rtol=1e-2), f"self-attn err={err}"

    # 2) cross-attention (separate projection path), f32, no mask
    out_x = jax.block_until_ready(
        multi_head_attention(x, k_cross, v_cross, None, params, h=h))
    ref_x = _reference(x, k_cross, v_cross, None, params, h=h)
    err_x = float(jnp.max(jnp.abs(out_x - ref_x)))
    assert jnp.allclose(out_x, ref_x, atol=1e-2, rtol=1e-2), f"cross-attn err={err_x}"

    # 3) bf16 fast path (native-dtype MXU operands), looser tolerance
    params_bf = tuple(p.astype(jnp.bfloat16) for p in params)
    x_bf = x.astype(jnp.bfloat16)
    out_bf = jax.block_until_ready(
        multi_head_attention(x_bf, x_bf, x_bf, mask, params_bf, h=h))
    out_bf = out_bf.astype(jnp.float32)
    err_bf = float(jnp.max(jnp.abs(out_bf - ref)))
    assert jnp.allclose(out_bf, ref, atol=1.5e-1, rtol=1e-1), f"bf16 err={err_bf}"

    print("KERNEL_OK")
</pallas_src>

<mosaic_0001>
module attributes {stable_mosaic.version = 11 : i64} {
  func.func @kernel(%arg0: i32, %arg1: i32, %arg2: memref<16x32xf32, #tpu.memory_space<vmem>>, %arg3: memref<32x32xf32, #tpu.memory_space<vmem>>, %arg4: memref<32x32xf32, #tpu.memory_space<vmem>>, %arg5: memref<32x32xf32, #tpu.memory_space<vmem>>, %arg6: memref<1x32xf32, #tpu.memory_space<vmem>>, %arg7: memref<1x32xf32, #tpu.memory_space<vmem>>, %arg8: memref<1x32xf32, #tpu.memory_space<vmem>>, %arg9: memref<16x32xf32, #tpu.memory_space<vmem>>, %arg10: memref<16x32xf32, #tpu.memory_space<vmem>>, %arg11: memref<16x32xf32, #tpu.memory_space<vmem>>) attributes {dimension_semantics = [#tpu.dimension_semantics<parallel>, #tpu.dimension_semantics<parallel>], iteration_bounds = array<i64: 1, 1>, scalar_prefetch = 0 : i64, scratch_operands = 0 : i64, tpu.core_type = #tpu.core_type<tc>, window_params = [{transform_indices = @transform_0, window_bounds = array<i64: 16, 32>}, {transform_indices = @transform_1, window_bounds = array<i64: 32, 32>}, {transform_indices = @transform_2, window_bounds = array<i64: 32, 32>}, {transform_indices = @transform_3, window_bounds = array<i64: 32, 32>}, {transform_indices = @transform_4, window_bounds = array<i64: 1, 32>}, {transform_indices = @transform_5, window_bounds = array<i64: 1, 32>}, {transform_indices = @transform_6, window_bounds = array<i64: 1, 32>}, {transform_indices = @transform_7, window_bounds = array<i64: 16, 32>}, {transform_indices = @transform_8, window_bounds = array<i64: 16, 32>}, {transform_indices = @transform_9, window_bounds = array<i64: 16, 32>}]} {
    %c0 = arith.constant 0 : index
    %c0_0 = arith.constant 0 : index
    %0 = vector.load %arg2[%c0, %c0_0] : memref<16x32xf32, #tpu.memory_space<vmem>>, vector<16x32xf32>
    %c0_1 = arith.constant 0 : index
    %c0_2 = arith.constant 0 : index
    %1 = vector.load %arg3[%c0_1, %c0_2] : memref<32x32xf32, #tpu.memory_space<vmem>>, vector<32x32xf32>
    %cst = arith.constant dense<0.000000e+00> : vector<16x32xf32>
    %2 = tpu.matmul %0, %1, %cst {dimension_numbers = #tpu.dot_dimension_numbers<[1], [0], [0], [1], [0, 0, 1, 1], [], []>} : vector<16x32xf32>, vector<32x32xf32>, vector<16x32xf32> -> vector<16x32xf32>
    %c0_3 = arith.constant 0 : index
    %c0_4 = arith.constant 0 : index
    %3 = vector.load %arg6[%c0_3, %c0_4] : memref<1x32xf32, #tpu.memory_space<vmem>>, vector<1x32xf32>
    %4 = vector.broadcast %3 : vector<1x32xf32> to vector<16x32xf32>
    %5 = arith.addf %2, %4 : vector<16x32xf32>
    %c0_5 = arith.constant 0 : index
    %c0_6 = arith.constant 0 : index
    %6 = vector.load %arg9[%c0_5, %c0_6] : memref<16x32xf32, #tpu.memory_space<vmem>>, vector<16x32xf32>
    tpu.vector_store %arg9[%c0_5, %c0_6], %5 {strides = array<i32>} : memref<16x32xf32, #tpu.memory_space<vmem>>, vector<16x32xf32>,
    %c0_7 = arith.constant 0 : index
    %c0_8 = arith.constant 0 : index
    %7 = vector.load %arg4[%c0_7, %c0_8] : memref<32x32xf32, #tpu.memory_space<vmem>>, vector<32x32xf32>
    %cst_9 = arith.constant dense<0.000000e+00> : vector<16x32xf32>
    %8 = tpu.matmul %0, %7, %cst_9 {dimension_numbers = #tpu.dot_dimension_numbers<[1], [0], [0], [1], [0, 0, 1, 1], [], []>} : vector<16x32xf32>, vector<32x32xf32>, vector<16x32xf32> -> vector<16x32xf32>
    %c0_10 = arith.constant 0 : index
    %c0_11 = arith.constant 0 : index
    %9 = vector.load %arg7[%c0_10, %c0_11] : memref<1x32xf32, #tpu.memory_space<vmem>>, vector<1x32xf32>
    %10 = vector.broadcast %9 : vector<1x32xf32> to vector<16x32xf32>
    %11 = arith.addf %8, %10 : vector<16x32xf32>
    %c0_12 = arith.constant 0 : index
    %c0_13 = arith.constant 0 : index
    %12 = vector.load %arg10[%c0_12, %c0_13] : memref<16x32xf32, #tpu.memory_space<vmem>>, vector<16x32xf32>
    tpu.vector_store %arg10[%c0_12, %c0_13], %11 {strides = array<i32>} : memref<16x32xf32, #tpu.memory_space<vmem>>, vector<16x32xf32>,
    %c0_14 = arith.constant 0 : index
    %c0_15 = arith.constant 0 : index
    %13 = vector.load %arg5[%c0_14, %c0_15] : memref<32x32xf32, #tpu.memory_space<vmem>>, vector<32x32xf32>
    %cst_16 = arith.constant dense<0.000000e+00> : vector<16x32xf32>
    %14 = tpu.matmul %0, %13, %cst_16 {dimension_numbers = #tpu.dot_dimension_numbers<[1], [0], [0], [1], [0, 0, 1, 1], [], []>} : vector<16x32xf32>, vector<32x32xf32>, vector<16x32xf32> -> vector<16x32xf32>
    %c0_17 = arith.constant 0 : index
    %c0_18 = arith.constant 0 : index
    %15 = vector.load %arg8[%c0_17, %c0_18] : memref<1x32xf32, #tpu.memory_space<vmem>>, vector<1x32xf32>
    %16 = vector.broadcast %15 : vector<1x32xf32> to vector<16x32xf32>
    %17 = arith.addf %14, %16 : vector<16x32xf32>
    %c0_19 = arith.constant 0 : index
    %c0_20 = arith.constant 0 : index
    %18 = vector.load %arg11[%c0_19, %c0_20] : memref<16x32xf32, #tpu.memory_space<vmem>>, vector<16x32xf32>
    tpu.vector_store %arg11[%c0_19, %c0_20], %17 {strides = array<i32>} : memref<16x32xf32, #tpu.memory_space<vmem>>, vector<16x32xf32>,
    return
  }
  func.func @transform_0(%arg0: i32, %arg1: i32) -> (i32, i32) {
    %c0_i32 = arith.constant 0 : i32
    %c0_i32_0 = arith.constant 0 : i32
    return %arg0, %c0_i32 : i32, i32
  }
  func.func @transform_1(%arg0: i32, %arg1: i32) -> (i32, i32) {
    %c0_i32 = arith.constant 0 : i32
    %c0_i32_0 = arith.constant 0 : i32
    return %c0_i32, %arg1 : i32, i32
  }
  func.func @transform_2(%arg0: i32, %arg1: i32) -> (i32, i32) {
    %c0_i32 = arith.constant 0 : i32
    %c0_i32_0 = arith.constant 0 : i32
    return %c0_i32, %arg1 : i32, i32
  }
  func.func @transform_3(%arg0: i32, %arg1: i32) -> (i32, i32) {
    %c0_i32 = arith.constant 0 : i32
    %c0_i32_0 = arith.constant 0 : i32
    return %c0_i32, %arg1 : i32, i32
  }
  func.func @transform_4(%arg0: i32, %arg1: i32) -> (i32, i32) {
    %c0_i32 = arith.constant 0 : i32
    %c0_i32_0 = arith.constant 0 : i32
    return %c0_i32, %arg1 : i32, i32
  }
  func.func @transform_5(%arg0: i32, %arg1: i32) -> (i32, i32) {
    %c0_i32 = arith.constant 0 : i32
    %c0_i32_0 = arith.constant 0 : i32
    return %c0_i32, %arg1 : i32, i32
  }
  func.func @transform_6(%arg0: i32, %arg1: i32) -> (i32, i32) {
    %c0_i32 = arith.constant 0 : i32
    %c0_i32_0 = arith.constant 0 : i32
    return %c0_i32, %arg1 : i32, i32
  }
  func.func @transform_7(%arg0: i32, %arg1: i32) -> (i32, i32) {
    %c0_i32 = arith.constant 0 : i32
    return %arg0, %arg1 : i32, i32
  }
  func.func @transform_8(%arg0: i32, %arg1: i32) -> (i32, i32) {
    %c0_i32 = arith.constant 0 : i32
    return %arg0, %arg1 : i32, i32
  }
  func.func @transform_9(%arg0: i32, %arg1: i32) -> (i32, i32) {
    %c0_i32 = arith.constant 0 : i32
    return %arg0, %arg1 : i32, i32
  }
}

</mosaic_0001>

<llo_original>
// kernel: tpu_custom_call.1
$region0: #{tpu_custom_call.1}
  #allocation0 [shape = 'u32[]', space=smem, size = 0x4, offset = 0x4, fixed_abs, tag = 'smem constant byte address 0x4 - core index']
  #allocation1 [shape = 'u32[144,128]{1,0:T(1,128)}', space=vmem, size = 0x12000, scoped, tag = 'internal scratch']
  %s0 = inlined_call_operand.hbm [shape: f32[16,32], index: 0, kind: input, shape index: {}]
  %s1 = inlined_call_operand.hbm [shape: f32[32,32], index: 1, kind: input, shape index: {}]
  %s2 = inlined_call_operand.hbm [shape: f32[32,32], index: 2, kind: input, shape index: {}]
  %s3 = inlined_call_operand.hbm [shape: f32[32,32], index: 3, kind: input, shape index: {}]
  %s4 = inlined_call_operand.vmem [shape: f32[1,32], index: 4, kind: input, shape index: {}]
  %s5 = inlined_call_operand.vmem [shape: f32[1,32], index: 5, kind: input, shape index: {}]
  %s6 = inlined_call_operand.vmem [shape: f32[1,32], index: 6, kind: input, shape index: {}]
  %s7 = inlined_call_operand.hbm [shape: f32[16,32], index: 7, kind: output, shape index: {0}]
  %s8 = inlined_call_operand.hbm [shape: f32[16,32], index: 8, kind: output, shape index: {1}]
  %s9 = inlined_call_operand.hbm [shape: f32[16,32], index: 9, kind: output, shape index: {2}]
  %10 = xla_tuple %s7, %s8, %s9
  %s11 = sld [smem:[#allocation0]]
  $region70: #{tpu_custom_call.1} parent=0
    _
  %s13 = ssub.s32 1, %s11
  %s14 = scalar_select 0, %s13, %s11
  $region1: #{tpu_custom_call.1} parent=0
    #allocation2 [shape = 'u8[8192]{0}', space=vmem, size = 0x2000, scoped, tag = 'input window, operand 0, single buffered']
    #allocation3 [shape = 's32[1]{0}', space=sflag, size = 0x4, scoped, tag = 'scoped memory for tpu_custom_call.1']
    #allocation4 [shape = 's32[1]{0}', space=sflag, size = 0x4, scoped, tag = 'scoped memory for tpu_custom_call.1']
    #allocation5 [shape = 'u8[16384]{0}', space=vmem, size = 0x4000, scoped, tag = 'input window, operand 1, single buffered']
    #allocation6 [shape = 's32[1]{0}', space=sflag, size = 0x4, scoped, tag = 'scoped memory for tpu_custom_call.1']
    #allocation7 [shape = 'u8[16384]{0}', space=vmem, size = 0x4000, scoped, tag = 'input window, operand 2, single buffered']
    #allocation8 [shape = 'u8[16384]{0}', space=vmem, size = 0x4000, scoped, tag = 'input window, operand 3, single buffered']
    #allocation9 [shape = 's32[1]{0}', space=sflag, size = 0x4, scoped, tag = 'scoped memory for tpu_custom_call.1']
    #allocation10 [shape = 'u8[8192]{0}', space=vmem, size = 0x2000, scoped, tag = 'output window, operand 0, single buffered']
    #allocation11 [shape = 'u8[8192]{0}', space=vmem, size = 0x2000, scoped, tag = 'output window, operand 1, single buffered']
    #allocation12 [shape = 's32[1]{0}', space=sflag, size = 0x4, scoped, tag = 'scoped memory for tpu_custom_call.1']
    #allocation13 [shape = 'u8[8192]{0}', space=vmem, size = 0x2000, scoped, tag = 'output window, operand 2, single buffered']
    %15 = vsyncpa [#allocation3], 0
    %16 = vsyncpa [#allocation6], 0
    %17 = vsyncpa [#allocation9], 0
    %18 = vsyncpa [#allocation4], 0
    %19 = vsyncpa [#allocation12], 0
    // Predicated region
    $region2: #{tpu_custom_call.1} parent=1 // pred_check
      _
    $region3: #{tpu_custom_call.1} parent=1 // pred_check_branch
      %21 = sbr.rel (0) target = $region5
    $region4: #{tpu_custom_call.1} parent=1 // pred_region
      %s23 = ssub.s32 256, 256
      %24 = vsyncadd [#allocation3], %s23
      %s25 = sshll.u32 [#allocation2], 4
      %s26 = int_to_ptr.vmem [resolvable:$true] %s25
      %31 = dma.hbm_to_vmem [thread:$0]  %s0, 256, %s26, [#allocation3], 128, 128, 8
    $region5: #{tpu_custom_call.1} parent=1 // pred_fallthru
      _
    // Predicated region
    $region6: #{tpu_custom_call.1} parent=1 // pred_check
      _
    $region7: #{tpu_custom_call.1} parent=1 // pred_check_branch
      %33 = sbr.rel (0) target = $region9
    $region8: #{tpu_custom_call.1} parent=1 // pred_region
      %s35 = ssub.s32 512, 512
      %36 = vsyncadd [#allocation6], %s35
      %s37 = sshll.u32 [#allocation5], 4
      %s38 = int_to_ptr.vmem [resolvable:$true] %s37
      %43 = dma.hbm_to_vmem [thread:$0]  %s1, 512, %s38, [#allocation6], 128, 128, 8
    $region9: #{tpu_custom_call.1} parent=1 // pred_fallthru
      _
    // Predicated region
    $region10: #{tpu_custom_call.1} parent=1 // pred_check
      _
    $region11: #{tpu_custom_call.1} parent=1 // pred_check_branch
      %45 = sbr.rel (0) target = $region13
    $region12: #{tpu_custom_call.1} parent=1 // pred_region
      %s47 = ssub.s32 512, 512
      %48 = vsyncadd [#allocation6], %s47
      %s49 = sshll.u32 [#allocation7], 4
      %s50 = int_to_ptr.vmem [resolvable:$true] %s49
      %55 = dma.hbm_to_vmem [thread:$0]  %s2, 512, %s50, [#allocation6], 128, 128, 8
    $region13: #{tpu_custom_call.1} parent=1 // pred_fallthru
      _
    // Predicated region
    $region14: #{tpu_custom_call.1} parent=1 // pred_check
      _
    $region15: #{tpu_custom_call.1} parent=1 // pred_check_branch
      %57 = sbr.rel (0) target = $region17
    $region16: #{tpu_custom_call.1} parent=1 // pred_region
      %s59 = ssub.s32 512, 512
      %60 = vsyncadd [#allocation9], %s59
      %s61 = sshll.u32 [#allocation8], 4
      %s62 = int_to_ptr.vmem [resolvable:$true] %s61
      %67 = dma.hbm_to_vmem [thread:$0]  %s3, 512, %s62, [#allocation9], 128, 128, 8
    $region17: #{tpu_custom_call.1} parent=1 // pred_fallthru
      _
    // Predicated region
    $region18: #{tpu_custom_call.1} parent=1 // pred_check
      _
    $region19: #{tpu_custom_call.1} parent=1 // pred_check_branch
      %69 = sbr.rel (0) target = $region21
    $region20: #{tpu_custom_call.1} parent=1 // pred_region
      _
    $region21: #{tpu_custom_call.1} parent=1 // pred_fallthru
      _
    // Predicated region
    $region22: #{tpu_custom_call.1} parent=1 // pred_check
      _
    $region23: #{tpu_custom_call.1} parent=1 // pred_check_branch
      %71 = sbr.rel (0) target = $region25
    $region24: #{tpu_custom_call.1} parent=1 // pred_region
      _
    $region25: #{tpu_custom_call.1} parent=1 // pred_fallthru
      _
    // Predicated region
    $region26: #{tpu_custom_call.1} parent=1 // pred_check
      _
    $region27: #{tpu_custom_call.1} parent=1 // pred_check_branch
      %73 = sbr.rel (0) target = $region29
    $region28: #{tpu_custom_call.1} parent=1 // pred_region
      _
    $region29: #{tpu_custom_call.1} parent=1 // pred_fallthru
      _
    // Predicated region
    $region30: #{tpu_custom_call.1} parent=1 // pred_check
      _
    $region31: #{tpu_custom_call.1} parent=1 // pred_check_branch
      %75 = sbr.rel (0) target = $region33
    $region32: #{tpu_custom_call.1} parent=1 // pred_region
      %76 = dma.done [#allocation3], 256
    $region33: #{tpu_custom_call.1} parent=1 // pred_fallthru
      _
    // Predicated region
    $region34: #{tpu_custom_call.1} parent=1 // pred_check
      _
    $region35: #{tpu_custom_call.1} parent=1 // pred_check_branch
      %78 = sbr.rel (0) target = $region37
    $region36: #{tpu_custom_call.1} parent=1 // pred_region
      %79 = dma.done [#allocation6], 512
    $region37: #{tpu_custom_call.1} parent=1 // pred_fallthru
      _
    // Predicated region
    $region38: #{tpu_custom_call.1} parent=1 // pred_check
      _
    $region39: #{tpu_custom_call.1} parent=1 // pred_check_branch
      %81 = sbr.rel (0) target = $region41
    $region40: #{tpu_custom_call.1} parent=1 // pred_region
      %82 = dma.done [#allocation6], 512
    $region41: #{tpu_custom_call.1} parent=1 // pred_fallthru
      _
    // Predicated region
    $region42: #{tpu_custom_call.1} parent=1 // pred_check
      _
    $region43: #{tpu_custom_call.1} parent=1 // pred_check_branch
      %84 = sbr.rel (0) target = $region45
    $region44: #{tpu_custom_call.1} parent=1 // pred_region
      %85 = dma.done [#allocation9], 512
    $region45: #{tpu_custom_call.1} parent=1 // pred_fallthru
      _
    %v86 = vld [vmem:[#allocation2] sm:$0xff]
    %v87 = vld [vmem:[#allocation2 + $0x8] sm:$0xff]
    %v88 = vld [vmem:[#allocation5] sm:$0xff]
    %v89 = vld [vmem:[#allocation5 + $0x8] sm:$0xff]
    %v90 = vld [vmem:[#allocation5 + $0x10] sm:$0xff]
    %v91 = vld [vmem:[#allocation5 + $0x18] sm:$0xff]
    %v92 = vld [vmem:[%s4] sm:$0x1]
    %v94 = vlaneseq
    %v95 = vshrl.u32 %v94, 7
    %v96 = vsub.s32 0, %v95
    %v97 = vrot.slane %v92, %v96
    %vm99 = vcmask 261120
    %v101 = vsel %vm99, %v86, 0
    %v104 = vsel %vm99, %v87, 0
    %106 = vmatprep.subr.mxu0 0.0
    %107 = vmatpush1.msra.mxu0 0.0
    %108 = vmatprep.subr.mxu0 0.0
    %109 = vmatpush1.msra.mxu0 0.0
    %110 = vmatprep.subr.mxu0 0.0
    %111 = vmatpush1.msra.mxu0 0.0
    %112 = vmatprep.subr.mxu0 0.0
    %113 = vmatpush1.msra.mxu0 0.0
    %114 = vmatprep.subr.mxu0 0.0
    %115 = vmatpush1.msra.mxu0 0.0
    %116 = vmatprep.subr.mxu0 0.0
    %117 = vmatpush1.msra.mxu0 0.0
    %118 = vmatprep.subr.mxu0 0.0
    %119 = vmatpush1.msra.mxu0 0.0
    %120 = vmatprep.subr.mxu0 0.0
    %121 = vmatpush1.msra.mxu0 0.0
    %122 = vmatprep.subr.mxu0 0.0
    %123 = vmatpush1.msra.mxu0 0.0
    %124 = vmatprep.subr.mxu0 0.0
    %125 = vmatpush1.msra.mxu0 0.0
    %126 = vmatprep.subr.mxu0 0.0
    %127 = vmatpush1.msra.mxu0 0.0
    %128 = vmatprep.subr.mxu0 0.0
    %129 = vmatpush1.msra.mxu0 0.0
    %130 = vmatprep.subr.mxu0 0.0
    %131 = vmatpush1.msra.mxu0 %v91
    %132 = vmatprep.subr.mxu0 0.0
    %133 = vmatpush1.msra.mxu0 %v90
    %134 = vmatprep.subr.mxu0 0.0
    %135 = vmatpush1.msra.mxu0 %v89
    %136 = vmatprep.subr.mxu0 0.0
    %137 = vmatpush1.msra.mxu0 %v88
    %138 = vmatprep.subr.mxu0 0.0
    %139 = vmatpush2.msra.mxu0 0.0
    %140 = vmatprep.subr.mxu0 0.0
    %141 = vmatpush2.msra.mxu0 0.0
    %142 = vmatprep.subr.mxu0 0.0
    %143 = vmatpush2.msra.mxu0 0.0
    %144 = vmatprep.subr.mxu0 0.0
    %145 = vmatpush2.msra.mxu0 0.0
    %146 = vmatprep.subr.mxu0 0.0
    %147 = vmatpush2.msra.mxu0 0.0
    %148 = vmatprep.subr.mxu0 0.0
    %149 = vmatpush2.msra.mxu0 0.0
    %150 = vmatprep.subr.mxu0 0.0
    %151 = vmatpush2.msra.mxu0 0.0
    %152 = vmatprep.subr.mxu0 0.0
    %153 = vmatpush2.msra.mxu0 0.0
    %154 = vmatprep.subr.mxu0 0.0
    %155 = vmatpush2.msra.mxu0 0.0
    %156 = vmatprep.subr.mxu0 0.0
    %157 = vmatpush2.msra.mxu0 0.0
    %158 = vmatprep.subr.mxu0 0.0
    %159 = vmatpush2.msra.mxu0 0.0
    %160 = vmatprep.subr.mxu0 0.0
    %161 = vmatpush2.msra.mxu0 0.0
    %162 = vmatprep.subr.mxu0 0.0
    %163 = vmatpush2.msra.mxu0 0.0
    %164 = vmatprep.subr.mxu0 0.0
    %165 = vmatpush2.msra.mxu0 0.0
    %166 = vmatprep.subr.mxu0 0.0
    %167 = vmatpush2.msra.mxu0 0.0
    %168 = vmatprep.subr.mxu0 0.0
    %169 = vmatpush2.msra.mxu0 0.0
    %170 = vmatprep.mubr.f32.mxu0 0.0
    %171 = vmatmul.mubr.f32.gmra.mxu0 %v101
    %v172 = vpop.f32.mrf.mxu0
    %v173 = vadd.f32 %v97, %v172
    %v174 = vpop.f32.mrf.mxu0
    %175 = vmatprep.mubr.f32.mxu0 0.0
    %176 = vmatmul.mubr.f32.gmra.mxu0 %v104
    %v177 = vpop.f32.mrf.mxu0
    %v178 = vadd.f32 %v97, %v177
    %v179 = vpop.f32.mrf.mxu0
    %180 = vdwg.mxu0
    %181 = vst.msk [vmem:[#allocation10] sm:$0xff] %vm99, %v173
    %182 = vst.msk [vmem:[#allocation10 + $0x8] sm:$0xff] %vm99, %v178
    %v183 = vld [vmem:[#allocation7] sm:$0xff]
    %v184 = vld [vmem:[#allocation7 + $0x8] sm:$0xff]
    %v185 = vld [vmem:[#allocation7 + $0x10] sm:$0xff]
    %v186 = vld [vmem:[#allocation7 + $0x18] sm:$0xff]
    %v187 = vld [vmem:[%s5] sm:$0x1]
    %v189 = vlaneseq
    %v190 = vshrl.u32 %v189, 7
    %v191 = vsub.s32 0, %v190
    %v192 = vrot.slane %v187, %v191
    %194 = vmatprep.subr.mxu0 0.0
    %195 = vmatpush1.msra.mxu0 0.0
    %196 = vmatprep.subr.mxu0 0.0
    %197 = vmatpush1.msra.mxu0 0.0
    %198 = vmatprep.subr.mxu0 0.0
    %199 = vmatpush1.msra.mxu0 0.0
    %200 = vmatprep.subr.mxu0 0.0
    %201 = vmatpush1.msra.mxu0 0.0
    %202 = vmatprep.subr.mxu0 0.0
    %203 = vmatpush1.msra.mxu0 0.0
    %204 = vmatprep.subr.mxu0 0.0
    %205 = vmatpush1.msra.mxu0 0.0
    %206 = vmatprep.subr.mxu0 0.0
    %207 = vmatpush1.msra.mxu0 0.0
    %208 = vmatprep.subr.mxu0 0.0
    %209 = vmatpush1.msra.mxu0 0.0
    %210 = vmatprep.subr.mxu0 0.0
    %211 = vmatpush1.msra.mxu0 0.0
    %212 = vmatprep.subr.mxu0 0.0
    %213 = vmatpush1.msra.mxu0 0.0
    %214 = vmatprep.subr.mxu0 0.0
    %215 = vmatpush1.msra.mxu0 0.0
    %216 = vmatprep.subr.mxu0 0.0
    %217 = vmatpush1.msra.mxu0 0.0
    %218 = vmatprep.subr.mxu0 0.0
    %219 = vmatpush1.msra.mxu0 %v186
    %220 = vmatprep.subr.mxu0 0.0
    %221 = vmatpush1.msra.mxu0 %v185
    %222 = vmatprep.subr.mxu0 0.0
    %223 = vmatpush1.msra.mxu0 %v184
    %224 = vmatprep.subr.mxu0 0.0
    %225 = vmatpush1.msra.mxu0 %v183
    %226 = vmatprep.subr.mxu0 0.0
    %227 = vmatpush2.msra.mxu0 0.0
    %228 = vmatprep.subr.mxu0 0.0
    %229 = vmatpush2.msra.mxu0 0.0
    %230 = vmatprep.subr.mxu0 0.0
    %231 = vmatpush2.msra.mxu0 0.0
    %232 = vmatprep.subr.mxu0 0.0
    %233 = vmatpush2.msra.mxu0 0.0
    %234 = vmatprep.subr.mxu0 0.0
    %235 = vmatpush2.msra.mxu0 0.0
    %236 = vmatprep.subr.mxu0 0.0
    %237 = vmatpush2.msra.mxu0 0.0
    %238 = vmatprep.subr.mxu0 0.0
    %239 = vmatpush2.msra.mxu0 0.0
    %240 = vmatprep.subr.mxu0 0.0
    %241 = vmatpush2.msra.mxu0 0.0
    %242 = vmatprep.subr.mxu0 0.0
    %243 = vmatpush2.msra.mxu0 0.0
    %244 = vmatprep.subr.mxu0 0.0
    %245 = vmatpush2.msra.mxu0 0.0
    %246 = vmatprep.subr.mxu0 0.0
    %247 = vmatpush2.msra.mxu0 0.0
    %248 = vmatprep.subr.mxu0 0.0
    %249 = vmatpush2.msra.mxu0 0.0
    %250 = vmatprep.subr.mxu0 0.0
    %251 = vmatpush2.msra.mxu0 0.0
    %252 = vmatprep.subr.mxu0 0.0
    %253 = vmatpush2.msra.mxu0 0.0
    %254 = vmatprep.subr.mxu0 0.0
    %255 = vmatpush2.msra.mxu0 0.0
    %256 = vmatprep.subr.mxu0 0.0
    %257 = vmatpush2.msra.mxu0 0.0
    %258 = vmatprep.mubr.f32.mxu0 0.0
    %259 = vmatmul.mubr.f32.gmra.mxu0 %v101
    %v260 = vpop.f32.mrf.mxu0
    %v261 = vadd.f32 %v192, %v260
    %v262 = vpop.f32.mrf.mxu0
    %263 = vmatprep.mubr.f32.mxu0 0.0
    %264 = vmatmul.mubr.f32.gmra.mxu0 %v104
    %v265 = vpop.f32.mrf.mxu0
    %v266 = vadd.f32 %v192, %v265
    %v267 = vpop.f32.mrf.mxu0
    %268 = vdwg.mxu0
    %269 = vst.msk [vmem:[#allocation11] sm:$0xff] %vm99, %v261
    %270 = vst.msk [vmem:[#allocation11 + $0x8] sm:$0xff] %vm99, %v266
    %v271 = vld [vmem:[#allocation8] sm:$0xff]
    %v272 = vld [vmem:[#allocation8 + $0x8] sm:$0xff]
    %v273 = vld [vmem:[#allocation8 + $0x10] sm:$0xff]
    %v274 = vld [vmem:[#allocation8 + $0x18] sm:$0xff]
    %v275 = vld [vmem:[%s6] sm:$0x1]
    %v277 = vlaneseq
    %v278 = vshrl.u32 %v277, 7
    %v279 = vsub.s32 0, %v278
    %v280 = vrot.slane %v275, %v279
    %282 = vmatprep.subr.mxu0 0.0
    %283 = vmatpush1.msra.mxu0 0.0
    %284 = vmatprep.subr.mxu0 0.0
    %285 = vmatpush1.msra.mxu0 0.0
    %286 = vmatprep.subr.mxu0 0.0
    %287 = vmatpush1.msra.mxu0 0.0
    %288 = vmatprep.subr.mxu0 0.0
    %289 = vmatpush1.msra.mxu0 0.0
    %290 = vmatprep.subr.mxu0 0.0
    %291 = vmatpush1.msra.mxu0 0.0
    %292 = vmatprep.subr.mxu0 0.0
    %293 = vmatpush1.msra.mxu0 0.0
    %294 = vmatprep.subr.mxu0 0.0
    %295 = vmatpush1.msra.mxu0 0.0
    %296 = vmatprep.subr.mxu0 0.0
    %297 = vmatpush1.msra.mxu0 0.0
    %298 = vmatprep.subr.mxu0 0.0
    %299 = vmatpush1.msra.mxu0 0.0
    %300 = vmatprep.subr.mxu0 0.0
    %301 = vmatpush1.msra.mxu0 0.0
    %302 = vmatprep.subr.mxu0 0.0
    %303 = vmatpush1.msra.mxu0 0.0
    %304 = vmatprep.subr.mxu0 0.0
    %305 = vmatpush1.msra.mxu0 0.0
    %306 = vmatprep.subr.mxu0 0.0
    %307 = vmatpush1.msra.mxu0 %v274
    %308 = vmatprep.subr.mxu0 0.0
    %309 = vmatpush1.msra.mxu0 %v273
    %310 = vmatprep.subr.mxu0 0.0
    %311 = vmatpush1.msra.mxu0 %v272
    %312 = vmatprep.subr.mxu0 0.0
    %313 = vmatpush1.msra.mxu0 %v271
    %314 = vmatprep.subr.mxu0 0.0
    %315 = vmatpush2.msra.mxu0 0.0
    %316 = vmatprep.subr.mxu0 0.0
    %317 = vmatpush2.msra.mxu0 0.0
    %318 = vmatprep.subr.mxu0 0.0
    %319 = vmatpush2.msra.mxu0 0.0
    %320 = vmatprep.subr.mxu0 0.0
    %321 = vmatpush2.msra.mxu0 0.0
    %322 = vmatprep.subr.mxu0 0.0
    %323 = vmatpush2.msra.mxu0 0.0
    %324 = vmatprep.subr.mxu0 0.0
    %325 = vmatpush2.msra.mxu0 0.0
    %326 = vmatprep.subr.mxu0 0.0
    %327 = vmatpush2.msra.mxu0 0.0
    %328 = vmatprep.subr.mxu0 0.0
    %329 = vmatpush2.msra.mxu0 0.0
    %330 = vmatprep.subr.mxu0 0.0
    %331 = vmatpush2.msra.mxu0 0.0
    %332 = vmatprep.subr.mxu0 0.0
    %333 = vmatpush2.msra.mxu0 0.0
    %334 = vmatprep.subr.mxu0 0.0
    %335 = vmatpush2.msra.mxu0 0.0
    %336 = vmatprep.subr.mxu0 0.0
    %337 = vmatpush2.msra.mxu0 0.0
    %338 = vmatprep.subr.mxu0 0.0
    %339 = vmatpush2.msra.mxu0 0.0
    %340 = vmatprep.subr.mxu0 0.0
    %341 = vmatpush2.msra.mxu0 0.0
    %342 = vmatprep.subr.mxu0 0.0
    %343 = vmatpush2.msra.mxu0 0.0
    %344 = vmatprep.subr.mxu0 0.0
    %345 = vmatpush2.msra.mxu0 0.0
    %346 = vmatprep.mubr.f32.mxu0 0.0
    %347 = vmatmul.mubr.f32.gmra.mxu0 %v101
    %v348 = vpop.f32.mrf.mxu0
    %v349 = vadd.f32 %v280, %v348
    %v350 = vpop.f32.mrf.mxu0
    %351 = vmatprep.mubr.f32.mxu0 0.0
    %352 = vmatmul.mubr.f32.gmra.mxu0 %v104
    %v353 = vpop.f32.mrf.mxu0
    %v354 = vadd.f32 %v280, %v353
    %v355 = vpop.f32.mrf.mxu0
    %356 = vdwg.mxu0
    %357 = vst.msk [vmem:[#allocation13] sm:$0xff] %vm99, %v349
    %358 = vst.msk [vmem:[#allocation13 + $0x8] sm:$0xff] %vm99, %v354
    // Predicated region
    $region46: #{tpu_custom_call.1} parent=1 // pred_check
      _
    $region47: #{tpu_custom_call.1} parent=1 // pred_check_branch
      %360 = sbr.rel (0) target = $region49
    $region48: #{tpu_custom_call.1} parent=1 // pred_region
      %s362 = ssub.s32 256, 256
      %363 = vsyncadd [#allocation4], %s362
      %s364 = sshll.u32 [#allocation10], 4
      %s365 = int_to_ptr.vmem [resolvable:$true] %s364
      %370 = dma.vmem_to_hbm [thread:$0]  %s365, 256, %s7, [#allocation4], 128, 128, 8
    $region49: #{tpu_custom_call.1} parent=1 // pred_fallthru
      _
    // Predicated region
    $region50: #{tpu_custom_call.1} parent=1 // pred_check
      _
    $region51: #{tpu_custom_call.1} parent=1 // pred_check_branch
      %372 = sbr.rel (0) target = $region53
    $region52: #{tpu_custom_call.1} parent=1 // pred_region
      %s374 = ssub.s32 256, 256
      %375 = vsyncadd [#allocation12], %s374
      %s376 = sshll.u32 [#allocation11], 4
      %s377 = int_to_ptr.vmem [resolvable:$true] %s376
      %382 = dma.vmem_to_hbm [thread:$0]  %s377, 256, %s8, [#allocation12], 128, 128, 8
    $region53: #{tpu_custom_call.1} parent=1 // pred_fallthru
      _
    // Predicated region
    $region54: #{tpu_custom_call.1} parent=1 // pred_check
      _
    $region55: #{tpu_custom_call.1} parent=1 // pred_check_branch
      %384 = sbr.rel (0) target = $region57
    $region56: #{tpu_custom_call.1} parent=1 // pred_region
      %s386 = ssub.s32 256, 256
      %387 = vsyncadd [#allocation12], %s386
      %s388 = sshll.u32 [#allocation13], 4
      %s389 = int_to_ptr.vmem [resolvable:$true] %s388
      %394 = dma.vmem_to_hbm [thread:$0]  %s389, 256, %s9, [#allocation12], 128, 128, 8
    $region57: #{tpu_custom_call.1} parent=1 // pred_fallthru
      _
    // Predicated region
    $region58: #{tpu_custom_call.1} parent=1 // pred_check
      _
    $region59: #{tpu_custom_call.1} parent=1 // pred_check_branch
      %396 = sbr.rel (0) target = $region61
    $region60: #{tpu_custom_call.1} parent=1 // pred_region
      %397 = dma.done [#allocation4], 256
    $region61: #{tpu_custom_call.1} parent=1 // pred_fallthru
      _
    // Predicated region
    $region62: #{tpu_custom_call.1} parent=1 // pred_check
      _
    $region63: #{tpu_custom_call.1} parent=1 // pred_check_branch
      %399 = sbr.rel (0) target = $region65
    $region64: #{tpu_custom_call.1} parent=1 // pred_region
      %400 = dma.done [#allocation12], 256
    $region65: #{tpu_custom_call.1} parent=1 // pred_fallthru
      _
    // Predicated region
    $region66: #{tpu_custom_call.1} parent=1 // pred_check
      _
    $region67: #{tpu_custom_call.1} parent=1 // pred_check_branch
      %402 = sbr.rel (0) target = $region69
    $region68: #{tpu_custom_call.1} parent=1 // pred_region
      %403 = dma.done [#allocation12], 256
    $region69: #{tpu_custom_call.1} parent=1 // pred_fallthru
      _
    %404 = vsyncpa [#allocation3], 1
    %405 = vsyncpa [#allocation6], 1
    %406 = vsyncpa [#allocation9], 1
    %407 = vsyncpa [#allocation4], 1
    %408 = vsyncpa [#allocation12], 1

</llo_original>
